<compile_context>
chip_gen: v7x
topology: tpu7x:2x2x1
jax: 0.10.0
libtpu: 0.0.40
codegen_flags: <defaults>
</compile_context>

<pallas_src>
import jax
import jax.numpy as jnp
from jax.experimental import pallas as pl
from jax.experimental.pallas import tpu as pltpu


# ---------------------------------------------------------------------------
# Helpers
# ---------------------------------------------------------------------------
def _round_up(x, m):
    return ((x + m - 1) // m) * m


def _pick_m_tile(m):
    # m is a multiple of 8 (B padded to 8 sublanes).
    if m <= 1024:
        return m
    for cand in (1024, 512, 256, 128, 64, 32, 16, 8):
        if m % cand == 0:
            return cand
    return m


def _pick_batch_tile(b_pad, t, h4, h):
    # Whole-sequence gate slab + hidden slab are double-buffered; keep well under the
    # v7x 64 MiB VMEM (smallest of the three generations).
    budget = 24 * 1024 * 1024

    def est(tb):
        return 4 * t * tb * 2 * (h4 + h) + 4 * tb * h * 2

    for cand in (b_pad, 512, 256, 128, 64, 32, 16, 8):
        if cand <= b_pad and b_pad % cand == 0 and est(cand) <= budget:
            return cand
    return 8


# ---------------------------------------------------------------------------
# Kernel 1: fused input projection for both directions of one layer.
#   gates_x[d] = sum_p  X_part[p] @ W_ih[d, p]  + (b_ih[d] + b_hh[d])
# grid = (2 directions, M tiles, input parts)  — parts is the (innermost) reduction axis.
# ---------------------------------------------------------------------------
def _proj_kernel(x_ref, w_ref, b_ref, o_ref, acc_ref):
    p = pl.program_id(2)

    @pl.when(p == 0)
    def _():
        acc_ref[...] = jnp.zeros_like(acc_ref)

    acc_ref[...] += jnp.dot(x_ref[...], w_ref[...], preferred_element_type=jnp.float32)

    @pl.when(p == pl.num_programs(2) - 1)
    def _():
        o_ref[...] = (acc_ref[...] + b_ref[...]).astype(o_ref.dtype)


def _input_projection(parts, w_t, bias):
    """parts: (P, M, K) f32;  w_t: (2, P, K, 4H) f32;  bias: (2, 1, 4H) f32.
    Returns gates_x: (2, M, 4H) f32."""
    P, M, K = parts.shape
    H4 = w_t.shape[-1]
    TM = _pick_m_tile(M)
    grid = (2, M // TM, P)
    return pl.pallas_call(
        _proj_kernel,
        out_shape=jax.ShapeDtypeStruct((2, M, H4), jnp.float32),
        grid=grid,
        in_specs=[
            pl.BlockSpec((None, TM, K), lambda d, m, p: (p, m, 0)),
            pl.BlockSpec((None, None, K, H4), lambda d, m, p: (d, p, 0, 0)),
            pl.BlockSpec((None, 1, H4), lambda d, m, p: (d, 0, 0)),
        ],
        out_specs=pl.BlockSpec((None, TM, H4), lambda d, m, p: (d, m, 0)),
        scratch_shapes=[pltpu.VMEM((TM, H4), jnp.float32)],
        compiler_params=pltpu.CompilerParams(
            dimension_semantics=("parallel", "parallel", "arbitrary")),
    )(parts, w_t, bias)


# ---------------------------------------------------------------------------
# Kernel 2: the sequential recurrence for one layer, both directions.
# grid = (direction=2 [parallel -> v7x 2nd TC], batch tiles [parallel]).
# Time loop lives inside the kernel; h/c are fori_loop carries (vregs).
# ---------------------------------------------------------------------------
def _bilstm_seq_kernel(gx_ref, whh_ref, hseq_ref, hfin_ref):
    # gx_ref:   (T, TB, 4H)  precomputed x-projection (+bias) for this direction, fwd order
    # whh_ref:  (H, 4H)      recurrent weights, pre-transposed
    # hseq_ref: (T, TB, H)   hidden sequence output, original time order
    # hfin_ref: (TB, H)      final hidden state of this direction
    d = pl.program_id(0)                      # 0 = forward, 1 = backward
    T, TB, H4 = gx_ref.shape
    H = H4 // 4
    t_last = T - 1
    whh = whh_ref[...]                         # stays resident in vregs/VMEM

    def step(t, carry):
        h_prev, c_prev = carry
        # forward: t_idx = t; backward: t_idx = T-1-t (pure scalar-int arithmetic)
        t_idx = t + d * (t_last - 2 * t)
        gates = gx_ref[t_idx] + jnp.dot(h_prev, whh,
                                        preferred_element_type=jnp.float32)  # (TB, 4H)
        # PyTorch gate order i, f, g, o
        i_g = jax.nn.sigmoid(gates[:, 0 * H:1 * H])
        f_g = jax.nn.sigmoid(gates[:, 1 * H:2 * H])
        g_g = jnp.tanh(gates[:, 2 * H:3 * H])
        o_g = jax.nn.sigmoid(gates[:, 3 * H:4 * H])
        c_new = f_g * c_prev + i_g * g_g
        h_new = o_g * jnp.tanh(c_new)
        hseq_ref[t_idx] = h_new.astype(hseq_ref.dtype)
        return h_new, c_new

    h0 = jnp.zeros((TB, H), jnp.float32)
    c0 = jnp.zeros((TB, H), jnp.float32)
    h_fin, _ = jax.lax.fori_loop(0, T, step, (h0, c0), unroll=bool(T <= 16))
    hfin_ref[...] = h_fin.astype(hfin_ref.dtype)


def _bilstm_recurrence(gates_x, w_hh_t):
    """gates_x: (2, T, B_pad, 4H) f32; w_hh_t: (2, H, 4H) f32.
    Returns h_seq (2, T, B_pad, H) and finals (2, B_pad, H)."""
    _, T, B_pad, H4 = gates_x.shape
    H = H4 // 4
    TB = _pick_batch_tile(B_pad, T, H4, H)
    nb = B_pad // TB
    return pl.pallas_call(
        _bilstm_seq_kernel,
        out_shape=(
            jax.ShapeDtypeStruct((2, T, B_pad, H), jnp.float32),
            jax.ShapeDtypeStruct((2, B_pad, H), jnp.float32),
        ),
        grid=(2, nb),
        in_specs=[
            pl.BlockSpec((None, T, TB, H4), lambda d, b: (d, 0, b, 0)),
            pl.BlockSpec((None, H, H4), lambda d, b: (d, 0, 0)),
        ],
        out_specs=(
            pl.BlockSpec((None, T, TB, H), lambda d, b: (d, 0, b, 0)),
            pl.BlockSpec((None, TB, H), lambda d, b: (d, b, 0)),
        ),
        compiler_params=pltpu.CompilerParams(
            dimension_semantics=("parallel", "parallel"),
            vmem_limit_bytes=48 * 1024 * 1024),
    )(gates_x, w_hh_t)


# ---------------------------------------------------------------------------
# Kernel 3: classifier  logits = [h_fwd_fin | h_bwd_fin] @ W^T + b   (VPU/XLU, no MXU).
# ---------------------------------------------------------------------------
def _classifier_kernel(bias_ref, hfin_ref, w_ref, o_ref):
    # hfin_ref: (2, B, H) VMEM, w_ref: (2, 1, H) VMEM, bias_ref: (1,) SMEM scalar.
    acc = hfin_ref[0] * w_ref[0] + hfin_ref[1] * w_ref[1]     # (B, H) on the VPU
    out = jnp.sum(acc, axis=-1, keepdims=True)                # XLU lane reduce -> (B, 1)
    o_ref[...] = (out + bias_ref[0]).astype(o_ref.dtype)


def _classifier_forward(finals, cls_w, cls_b):
    """finals: (2, B_pad, H) f32; cls_w: (1, 2H) (nn.Linear layout); cls_b: (1,)."""
    _, B_pad, H = finals.shape
    w = cls_w.reshape(2, 1, H)                # [0] multiplies fwd final, [1] bwd final
    return pl.pallas_call(
        _classifier_kernel,
        out_shape=jax.ShapeDtypeStruct((B_pad, 1), jnp.float32),
        grid=(1,),
        in_specs=[
            pl.BlockSpec(memory_space=pltpu.MemorySpace.SMEM),     # bias scalar
            pl.BlockSpec((2, B_pad, H), lambda i: (0, 0, 0)),
            pl.BlockSpec((2, 1, H), lambda i: (0, 0, 0)),
        ],
        out_specs=pl.BlockSpec((B_pad, 1), lambda i: (0, 0)),
        compiler_params=pltpu.CompilerParams(dimension_semantics=("arbitrary",)),
    )(cls_b, finals, w)


# ---------------------------------------------------------------------------
# Full model forward.
# ---------------------------------------------------------------------------
def bilstm_classifier_forward(x_btd, lstm_params, cls_w, cls_b):
    """x_btd: (B, T, E) f32; lstm_params: per-layer dicts (fwd + '_r' reverse weights)."""
    B, T, E = x_btd.shape
    B_pad = _round_up(max(B, 8), 8)                       # >= 8 sublanes per vreg tile
    x_tbd = jnp.transpose(x_btd, (1, 0, 2)).astype(jnp.float32)   # (T, B, E) layout glue
    if B_pad != B:
        x_tbd = jnp.pad(x_tbd, ((0, 0), (0, B_pad - B), (0, 0)))
    parts = x_tbd.reshape(1, T * B_pad, E)                # layer 0: single input part

    finals = None
    for lp in lstm_params:
        H4, d_in = lp["w_ih"].shape
        H = H4 // 4
        P, M, K = parts.shape
        assert P * K == d_in, (P, K, d_in)

        # One-time weight layout glue in plain JAX (pre-transposed, direction-stacked).
        w_ih_t = jnp.transpose(jnp.stack([lp["w_ih"], lp["w_ih_r"]], 0), (0, 2, 1))
        w_ih_t = w_ih_t.reshape(2, P, K, H4)              # (2, parts, K, 4H)
        bias = jnp.stack([lp["b_ih"] + lp["b_hh"],
                          lp["b_ih_r"] + lp["b_hh_r"]], 0).reshape(2, 1, H4)
        w_hh_t = jnp.transpose(jnp.stack([lp["w_hh"], lp["w_hh_r"]], 0), (0, 2, 1))

        gates_x = _input_projection(parts, w_ih_t, bias)          # (2, T*B_pad, 4H)
        h_seq, finals = _bilstm_recurrence(
            gates_x.reshape(2, T, B_pad, H4), w_hh_t)             # (2,T,Bp,H), (2,Bp,H)
        parts = h_seq.reshape(2, T * B_pad, H)                    # next layer's input parts

    # Dropout is identity at inference.
    # TODO(synk): train-mode dropout masking would use pltpu.prng_seed/prng_random_bits.
    logits = _classifier_forward(finals, cls_w, cls_b)            # (B_pad, 1)
    return logits[:B]


# ---------------------------------------------------------------------------
# Plain-JAX reference (PyTorch LSTM equations, f32 HIGHEST-precision matmuls).
# ---------------------------------------------------------------------------
def _ref_dir(x_tbd, w_ih, w_hh, b_ih, b_hh, reverse):
    T, B, _ = x_tbd.shape
    H = w_hh.shape[1]
    hi = jax.lax.Precision.HIGHEST
    h = jnp.zeros((B, H), jnp.float32)
    c = jnp.zeros((B, H), jnp.float32)
    outs = [None] * T
    order = range(T - 1, -1, -1) if reverse else range(T)
    for t in order:
        gates = (jnp.dot(x_tbd[t], w_ih.T, precision=hi)
                 + jnp.dot(h, w_hh.T, precision=hi) + b_ih + b_hh)
        i = jax.nn.sigmoid(gates[:, 0:H])
        f = jax.nn.sigmoid(gates[:, H:2 * H])
        g = jnp.tanh(gates[:, 2 * H:3 * H])
        o = jax.nn.sigmoid(gates[:, 3 * H:4 * H])
        c = f * c + i * g
        h = o * jnp.tanh(c)
        outs[t] = h
    return jnp.stack(outs, axis=0)


def ref_forward(x_btd, lstm_params, cls_w, cls_b):
    x_tbd = jnp.transpose(x_btd, (1, 0, 2))
    layer_in = x_tbd
    hf = hb = None
    for lp in lstm_params:
        hf = _ref_dir(layer_in, lp["w_ih"], lp["w_hh"], lp["b_ih"], lp["b_hh"], False)
        hb = _ref_dir(layer_in, lp["w_ih_r"], lp["w_hh_r"], lp["b_ih_r"], lp["b_hh_r"], True)
        layer_in = jnp.concatenate([hf, hb], axis=-1)
    final = jnp.concatenate([hf[-1], hb[0]], axis=-1)
    return jnp.dot(final, cls_w.T, precision=jax.lax.Precision.HIGHEST) + cls_b


if __name__ == "__main__":
    B, T, E, H, n_layers = 2, 8, 32, 32, 2

    key = jax.random.PRNGKey(0)
    keys = jax.random.split(key, 1 + 8 * n_layers + 2)
    kx = keys[0]

    def uinit(k, shape, bound):
        return jax.random.uniform(k, shape, jnp.float32, -bound, bound)

    bound = 1.0 / (H ** 0.5)
    lstm_params = []
    ki = 1
    for layer in range(n_layers):
        d_in = E if layer == 0 else 2 * H
        lp = {
            "w_ih":   uinit(keys[ki + 0], (4 * H, d_in), bound),
            "w_hh":   uinit(keys[ki + 1], (4 * H, H), bound),
            "b_ih":   uinit(keys[ki + 2], (4 * H,), bound),
            "b_hh":   uinit(keys[ki + 3], (4 * H,), bound),
            "w_ih_r": uinit(keys[ki + 4], (4 * H, d_in), bound),
            "w_hh_r": uinit(keys[ki + 5], (4 * H, H), bound),
            "b_ih_r": uinit(keys[ki + 6], (4 * H,), bound),
            "b_hh_r": uinit(keys[ki + 7], (4 * H,), bound),
        }
        ki += 8
        lstm_params.append(lp)

    cls_bound = 1.0 / ((2 * H) ** 0.5)
    cls_w = uinit(keys[ki], (1, 2 * H), cls_bound)
    cls_b = uinit(keys[ki + 1], (1,), cls_bound)

    x = jax.random.normal(kx, (B, T, E), jnp.float32)

    logits = bilstm_classifier_forward(x, lstm_params, cls_w, cls_b)
    logits = jax.block_until_ready(logits)

    ref = ref_forward(x, lstm_params, cls_w, cls_b)
    assert logits.shape == (B, 1), logits.shape
    assert jnp.allclose(logits, ref, atol=2e-3, rtol=2e-3), (logits, ref)

    print("KERNEL_OK")
</pallas_src>

<mosaic_0001>
module attributes {stable_mosaic.version = 11 : i64} {
  func.func @_proj_kernel(%arg0: i32, %arg1: i32, %arg2: i32, %arg3: memref<1x64x32xf32, #tpu.memory_space<vmem>>, %arg4: memref<1x1x32x128xf32, #tpu.memory_space<vmem>>, %arg5: memref<1x1x128xf32, #tpu.memory_space<vmem>>, %arg6: memref<1x64x128xf32, #tpu.memory_space<vmem>>, %arg7: memref<64x128xf32, #tpu.memory_space<vmem>>) attributes {dimension_semantics = [#tpu.dimension_semantics<parallel>, #tpu.dimension_semantics<parallel>, #tpu.dimension_semantics<arbitrary>], iteration_bounds = array<i64: 2, 1, 1>, scalar_prefetch = 0 : i64, scratch_operands = 1 : i64, tpu.core_type = #tpu.core_type<tc>, window_params = [{transform_indices = @transform_0, window_bounds = array<i64: 1, 64, 32>}, {transform_indices = @transform_1, window_bounds = array<i64: 1, 1, 32, 128>}, {transform_indices = @transform_2, window_bounds = array<i64: 1, 1, 128>}, {transform_indices = @transform_3, window_bounds = array<i64: 1, 64, 128>}]} {
    %c0_i32 = arith.constant 0 : i32
    %0 = arith.cmpi eq, %arg2, %c0_i32 : i32
    %1 = arith.extui %0 : i1 to i32
    %c0_i32_0 = arith.constant 0 : i32
    %2 = arith.cmpi ne, %1, %c0_i32_0 : i32
    scf.if %2 {
      %cst_13 = arith.constant 0.000000e+00 : f32
      %14 = vector.broadcast %cst_13 : f32 to vector<64x128xf32>
      %c0_14 = arith.constant 0 : index
      %c0_15 = arith.constant 0 : index
      %15 = vector.load %arg7[%c0_14, %c0_15] : memref<64x128xf32, #tpu.memory_space<vmem>>, vector<64x128xf32>
      tpu.vector_store %arg7[%c0_14, %c0_15], %14 {strides = array<i32>} : memref<64x128xf32, #tpu.memory_space<vmem>>, vector<64x128xf32>,
    } else {
    }
    %c0 = arith.constant 0 : index
    %c0_1 = arith.constant 0 : index
    %3 = vector.load %arg7[%c0, %c0_1] : memref<64x128xf32, #tpu.memory_space<vmem>>, vector<64x128xf32>
    %c0_2 = arith.constant 0 : index
    %c0_3 = arith.constant 0 : index
    %c0_4 = arith.constant 0 : index
    %4 = vector.load %arg3[%c0_2, %c0_3, %c0_4] : memref<1x64x32xf32, #tpu.memory_space<vmem>>, vector<1x64x32xf32>
    %5 = vector.shape_cast %4 : vector<1x64x32xf32> to vector<64x32xf32>
    %c0_5 = arith.constant 0 : index
    %c0_6 = arith.constant 0 : index
    %c0_7 = arith.constant 0 : index
    %c0_8 = arith.constant 0 : index
    %6 = vector.load %arg4[%c0_5, %c0_6, %c0_7, %c0_8] : memref<1x1x32x128xf32, #tpu.memory_space<vmem>>, vector<1x1x32x128xf32>
    %7 = vector.shape_cast %6 : vector<1x1x32x128xf32> to vector<32x128xf32>
    %cst = arith.constant dense<0.000000e+00> : vector<64x128xf32>
    %8 = tpu.matmul %5, %7, %cst {dimension_numbers = #tpu.dot_dimension_numbers<[1], [0], [0], [1], [0, 0, 1, 1], [], []>} : vector<64x32xf32>, vector<32x128xf32>, vector<64x128xf32> -> vector<64x128xf32>
    %9 = arith.addf %3, %8 : vector<64x128xf32>
    %c0_9 = arith.constant 0 : index
    %c0_10 = arith.constant 0 : index
    %10 = vector.load %arg7[%c0_9, %c0_10] : memref<64x128xf32, #tpu.memory_space<vmem>>, vector<64x128xf32>
    tpu.vector_store %arg7[%c0_9, %c0_10], %9 {strides = array<i32>} : memref<64x128xf32, #tpu.memory_space<vmem>>, vector<64x128xf32>,
    %c0_i32_11 = arith.constant 0 : i32
    %11 = arith.cmpi eq, %arg2, %c0_i32_11 : i32
    %12 = arith.extui %11 : i1 to i32
    %c0_i32_12 = arith.constant 0 : i32
    %13 = arith.cmpi ne, %12, %c0_i32_12 : i32
    scf.if %13 {
      %c0_13 = arith.constant 0 : index
      %c0_14 = arith.constant 0 : index
      %14 = vector.load %arg7[%c0_13, %c0_14] : memref<64x128xf32, #tpu.memory_space<vmem>>, vector<64x128xf32>
      %c0_15 = arith.constant 0 : index
      %c0_16 = arith.constant 0 : index
      %c0_17 = arith.constant 0 : index
      %15 = vector.load %arg5[%c0_15, %c0_16, %c0_17] : memref<1x1x128xf32, #tpu.memory_space<vmem>>, vector<1x1x128xf32>
      %16 = vector.shape_cast %15 : vector<1x1x128xf32> to vector<1x128xf32>
      %17 = vector.broadcast %16 : vector<1x128xf32> to vector<64x128xf32>
      %18 = arith.addf %14, %17 : vector<64x128xf32>
      %c0_18 = arith.constant 0 : index
      %c0_19 = arith.constant 0 : index
      %c0_20 = arith.constant 0 : index
      %19 = vector.load %arg6[%c0_18, %c0_19, %c0_20] : memref<1x64x128xf32, #tpu.memory_space<vmem>>, vector<1x64x128xf32>
      %20 = vector.shape_cast %19 : vector<1x64x128xf32> to vector<64x128xf32>
      %21 = vector.shape_cast %18 : vector<64x128xf32> to vector<1x64x128xf32>
      tpu.vector_store %arg6[%c0_18, %c0_19, %c0_20], %21 {strides = array<i32>} : memref<1x64x128xf32, #tpu.memory_space<vmem>>, vector<1x64x128xf32>,
    } else {
    }
    return
  }
  func.func @transform_0(%arg0: i32, %arg1: i32, %arg2: i32) -> (i32, i32, i32) {
    %c0_i32 = arith.constant 0 : i32
    %c0_i32_0 = arith.constant 0 : i32
    return %arg2, %arg1, %c0_i32 : i32, i32, i32
  }
  func.func @transform_1(%arg0: i32, %arg1: i32, %arg2: i32) -> (i32, i32, i32, i32) {
    %c0_i32 = arith.constant 0 : i32
    %c0_i32_0 = arith.constant 0 : i32
    %c0_i32_1 = arith.constant 0 : i32
    return %arg0, %arg2, %c0_i32, %c0_i32_0 : i32, i32, i32, i32
  }
  func.func @transform_2(%arg0: i32, %arg1: i32, %arg2: i32) -> (i32, i32, i32) {
    %c0_i32 = arith.constant 0 : i32
    %c0_i32_0 = arith.constant 0 : i32
    %c0_i32_1 = arith.constant 0 : i32
    return %arg0, %c0_i32, %c0_i32_0 : i32, i32, i32
  }
  func.func @transform_3(%arg0: i32, %arg1: i32, %arg2: i32) -> (i32, i32, i32) {
    %c0_i32 = arith.constant 0 : i32
    %c0_i32_0 = arith.constant 0 : i32
    return %arg0, %arg1, %c0_i32 : i32, i32, i32
  }
}

</mosaic_0001>

<llo_original>
// kernel: tpu_custom_call.1
$region0: #{tpu_custom_call.1}
  #allocation0 [shape = 'u32[]', space=smem, size = 0x4, offset = 0x4, fixed_abs, tag = 'smem constant byte address 0x4 - core index']
  #allocation1 [shape = 'u32[144,128]{1,0:T(1,128)}', space=vmem, size = 0x12000, scoped, tag = 'internal scratch']
  #allocation2 [shape = 'f32[64,128]{1,0:T(8,128)}', space=vmem, size = 0x8000, scoped, tag = 'scratch operand']
  %s0 = inlined_call_operand.vmem [shape: f32[1,64,32], index: 0, kind: input, shape index: {}]
  %s1 = inlined_call_operand.vmem [shape: f32[2,1,32,128], index: 1, kind: input, shape index: {}]
  %s2 = inlined_call_operand.vmem [shape: f32[2,1,128], index: 2, kind: input, shape index: {}]
  %s3 = inlined_call_operand.hbm [shape: f32[2,64,128], index: 3, kind: output, shape index: {}]
  %s4 = sld [smem:[#allocation0]]
  $region53: #{tpu_custom_call.1} parent=0
    _
  %s6 = ssub.s32 1, %s4
  %s7 = scalar_select 0, %s6, %s4
  $region1: #{tpu_custom_call.1} parent=0
    #allocation3 [shape = 'u8[65536]{0}', space=vmem, size = 0x10000, scoped, tag = 'output window, operand 0']
    #allocation4 [shape = 's32[2]{0}', space=sflag, size = 0x8, scoped, tag = 'scoped memory for tpu_custom_call.1']
    %8 = vsyncpa [#allocation4], 0
    %s9 = scalar_lea.sflag [#allocation4], 1
    %10 = vsyncpa %s9, 0
    loop: start=0, step=1, limit=4
    $region2: #{tpu_custom_call.1} parent=1 // loop_pre_header
      _
    $region3: #{tpu_custom_call.1} parent=1 // loop_header
      %s12 = sphi 0, %s16
      %p13 = scmp.ge.s32.totalorder %s12, 4
      %s19 = sphi 0, %s38
      %s20 = sphi 0, %s34
      %s21 = sphi 0, %s30
      %s22 = sphi 0, %s19
      %s23 = sphi 0, %s20
      %s24 = sphi 0, %s21
      %s25 = sphi 0, %s22
      %s26 = sphi 0, %s23
      %s27 = sphi 0, %s24
      %s43 = sphi 0, %s45
      %s46 = sphi 0, %s43
      %s47 = sphi 0, %s46
      %s63 = sphi 0, %s47
      %s71 = sphi 0, %s73
      %s74 = sphi 0, %s71
      %s75 = sphi 0, %s74
      %s91 = sphi 0, %s75
      %s97 = sphi 0, %s99
      %s100 = sphi 0, %s97
      %s101 = sphi 0, %s100
      %s117 = sphi 0, %s101
      %s125 = sphi 0, %s127
      %s128 = sphi 0, %s125
      %s129 = sphi 0, %s128
      %s145 = sphi 0, %s129
    $region4: #{tpu_custom_call.1} parent=1 // loop_header_branch
      %15 = sbr.rel (%p13) target = $region8
    $region5: #{tpu_custom_call.1} parent=1 // loop_body
      %s17 = ssub.s32 %s12, 1
      %s18 = ssub.s32 %s12, 2
      %s28 = sadd.s32 1, %s21
      %p29 = scmp.ge.s32.totalorder %s28, 1
      %s30 = scalar_select %p29, 0, %s28
      %s31 = sadd.s32 1, %s20
      %s32 = scalar_select %p29, %s31, %s20
      %p33 = scmp.ge.s32.totalorder %s32, 1
      %s34 = scalar_select %p33, 0, %s32
      %s35 = sadd.s32 1, %s19
      %s36 = scalar_select %p33, %s35, %s19
      %p37 = scmp.ge.s32.totalorder %s36, 2
      %s38 = scalar_select %p37, 0, %s36
      %s39 = ssub.s32 %s21, %s30
      %s40 = ssub.s32 %s20, %s34
      %s41 = sor.u32 %s39, %s40
      %p42 = scmp.eq.s32.totalorder %s41, 0
      %s44 = sadd.s32 %s43, 1
      %s45 = scalar_select %p42, %s43, %s44
      %p48 = pneg %p42
      %p49 = scmp.eq.s32.totalorder %s12, 1
      %p50 = por %p48, %p49
      %p51 = scmp.ne.s32.totalorder %s43, %s46
      %p52 = scmp.eq.s32.totalorder %s12, 0
      %p53 = por %p51, %p52
      %p54 = scmp.ne.s32.totalorder %s43, %s46
      %p55 = scmp.eq.s32.totalorder %s17, 1
      %p56 = por %p54, %p55
      %p57 = scmp.ne.s32.totalorder %s46, %s47
      %p58 = scmp.eq.s32.totalorder %s17, 0
      %p59 = por %p57, %p58
      %p60 = scmp.ne.s32.totalorder %s46, %s47
      %p61 = scmp.eq.s32.totalorder %s18, 1
      %p62 = por %p60, %p61
      %p64 = scmp.ne.s32.totalorder %s47, %s63
      %p65 = scmp.eq.s32.totalorder %s18, 0
      %p66 = por %p64, %p65
      %s67 = ssub.s32 %s19, %s38
      %s68 = ssub.s32 %s21, %s30
      %s69 = sor.u32 %s67, %s68
      %p70 = scmp.eq.s32.totalorder %s69, 0
      %s72 = sadd.s32 %s71, 1
      %s73 = scalar_select %p70, %s71, %s72
      %p76 = pneg %p70
      %p77 = scmp.eq.s32.totalorder %s12, 1
      %p78 = por %p76, %p77
      %p79 = scmp.ne.s32.totalorder %s71, %s74
      %p80 = scmp.eq.s32.totalorder %s12, 0
      %p81 = por %p79, %p80
      %p82 = scmp.ne.s32.totalorder %s71, %s74
      %p83 = scmp.eq.s32.totalorder %s17, 1
      %p84 = por %p82, %p83
      %p85 = scmp.ne.s32.totalorder %s74, %s75
      %p86 = scmp.eq.s32.totalorder %s17, 0
      %p87 = por %p85, %p86
      %p88 = scmp.ne.s32.totalorder %s74, %s75
      %p89 = scmp.eq.s32.totalorder %s18, 1
      %p90 = por %p88, %p89
      %p92 = scmp.ne.s32.totalorder %s75, %s91
      %p93 = scmp.eq.s32.totalorder %s18, 0
      %p94 = por %p92, %p93
      %s95 = ssub.s32 %s19, %s38
      %p96 = scmp.eq.s32.totalorder %s95, 0
      %s98 = sadd.s32 %s97, 1
      %s99 = scalar_select %p96, %s97, %s98
      %p102 = pneg %p96
      %p103 = scmp.eq.s32.totalorder %s12, 1
      %p104 = por %p102, %p103
      %p105 = scmp.ne.s32.totalorder %s97, %s100
      %p106 = scmp.eq.s32.totalorder %s12, 0
      %p107 = por %p105, %p106
      %p108 = scmp.ne.s32.totalorder %s97, %s100
      %p109 = scmp.eq.s32.totalorder %s17, 1
      %p110 = por %p108, %p109
      %p111 = scmp.ne.s32.totalorder %s100, %s101
      %p112 = scmp.eq.s32.totalorder %s17, 0
      %p113 = por %p111, %p112
      %p114 = scmp.ne.s32.totalorder %s100, %s101
      %p115 = scmp.eq.s32.totalorder %s18, 1
      %p116 = por %p114, %p115
      %p118 = scmp.ne.s32.totalorder %s101, %s117
      %p119 = scmp.eq.s32.totalorder %s18, 0
      %p120 = por %p118, %p119
      %s121 = ssub.s32 %s19, %s38
      %s122 = ssub.s32 %s20, %s34
      %s123 = sor.u32 %s121, %s122
      %p124 = scmp.eq.s32.totalorder %s123, 0
      %s126 = sadd.s32 %s125, 1
      %s127 = scalar_select %p124, %s125, %s126
      %p130 = pneg %p124
      %p131 = scmp.eq.s32.totalorder %s12, 1
      %p132 = por %p130, %p131
      %p133 = scmp.ne.s32.totalorder %s125, %s128
      %p134 = scmp.eq.s32.totalorder %s12, 0
      %p135 = por %p133, %p134
      %p136 = scmp.ne.s32.totalorder %s125, %s128
      %p137 = scmp.eq.s32.totalorder %s17, 1
      %p138 = por %p136, %p137
      %p139 = scmp.ne.s32.totalorder %s128, %s129
      %p140 = scmp.eq.s32.totalorder %s17, 0
      %p141 = por %p139, %p140
      %p142 = scmp.ne.s32.totalorder %s128, %s129
      %p143 = scmp.eq.s32.totalorder %s18, 1
      %p144 = por %p142, %p143
      %p146 = scmp.ne.s32.totalorder %s129, %s145
      %p147 = scmp.eq.s32.totalorder %s18, 0
      %p148 = por %p146, %p147
      %p149 = scmp.le.s32.totalorder 1, %s12
      %p150 = scmp.lt.s32.totalorder %s12, 3
      %p151 = pnand %p149, %p150
      %p152 = pneg %p151
      // Predicated region
      $region9: #{tpu_custom_call.1} parent=5 // pred_check
        _
      $region10: #{tpu_custom_call.1} parent=5 // pred_check_branch
        %154 = sbr.rel (%p151) target = $region12
      $region11: #{tpu_custom_call.1} parent=5 // pred_region
        %s155 = ssub.s32 %s12, 1
        // Predicated region
        $region13: #{tpu_custom_call.1} parent=11 // pred_check
          %p156 = pneg %p59
        $region14: #{tpu_custom_call.1} parent=11 // pred_check_branch
          %158 = sbr.rel (%p156) target = $region16
        $region15: #{tpu_custom_call.1} parent=11 // pred_region
          %s159 = smul.u32 8, %s23
          %p160 = scmp.lt.s32.totalorder %s24, 0
          %s161 = scalar_select %p160, %s24, 0
          %p162 = scmp.lt.s32.totalorder %s159, 7
          %s163 = scalar_select %p162, %s159, 7
          %s164 = smul.addr %s161, 8
          %s165 = sadd.s32 %s163, %s164
          %s166 = smul.addr %s165, 8
          %s167 = scalar_lea.vmem %s0, %s166
          %s168 = smul.u32 8, %s23
        $region16: #{tpu_custom_call.1} parent=11 // pred_fallthru
          _
      $region12: #{tpu_custom_call.1} parent=5 // pred_fallthru
        _
      %p169 = scmp.lt.s32.totalorder %s12, 2
      // Predicated region
      $region17: #{tpu_custom_call.1} parent=5 // pred_check
        %p170 = pneg %p169
      $region18: #{tpu_custom_call.1} parent=5 // pred_check_branch
        %172 = sbr.rel (%p170) target = $region20
      $region19: #{tpu_custom_call.1} parent=5 // pred_region
        // Predicated region
        $region21: #{tpu_custom_call.1} parent=19 // pred_check
          %p173 = pneg %p81
        $region22: #{tpu_custom_call.1} parent=19 // pred_check_branch
          %175 = sbr.rel (%p173) target = $region24
        $region23: #{tpu_custom_call.1} parent=19 // pred_region
          %p176 = scmp.lt.s32.totalorder %s19, 1
          %s177 = scalar_select %p176, %s19, 1
          %p178 = scmp.lt.s32.totalorder %s21, 0
          %s179 = scalar_select %p178, %s21, 0
          %s180 = smul.addr %s179, 4
          %s181 = smul.addr %s177, 4
          %s182 = sadd.s32 %s180, %s181
          %s183 = smul.addr %s182, 8
          %s184 = scalar_lea.vmem %s1, %s183
        $region24: #{tpu_custom_call.1} parent=19 // pred_fallthru
          _
        // Predicated region
        $region25: #{tpu_custom_call.1} parent=19 // pred_check
          %p185 = pneg %p107
        $region26: #{tpu_custom_call.1} parent=19 // pred_check_branch
          %187 = sbr.rel (%p185) target = $region28
        $region27: #{tpu_custom_call.1} parent=19 // pred_region
          %p188 = scmp.lt.s32.totalorder %s19, 1
          %s189 = scalar_select %p188, %s19, 1
          %s190 = scalar_lea.vmem %s2, %s189
        $region28: #{tpu_custom_call.1} parent=19 // pred_fallthru
          _
      $region20: #{tpu_custom_call.1} parent=5 // pred_fallthru
        _
      %p191 = scmp.le.s32.totalorder 1, %s12
      %p192 = scmp.lt.s32.totalorder %s12, 3
      %p193 = pnand %p191, %p192
      %p194 = pneg %p193
      // Predicated region
      $region29: #{tpu_custom_call.1} parent=5 // pred_check
        _
      $region30: #{tpu_custom_call.1} parent=5 // pred_check_branch
        %196 = sbr.rel (%p193) target = $region32
      $region31: #{tpu_custom_call.1} parent=5 // pred_region
        %s197 = ssub.s32 %s12, 1
        %s198 = smul.u32 8, %s23
        %p199 = scmp.lt.s32.totalorder %s24, 0
        %s200 = scalar_select %p199, %s24, 0
        %p201 = scmp.lt.s32.totalorder %s198, 7
        %s202 = scalar_select %p201, %s198, 7
        %s203 = smul.addr %s200, 8
        %s204 = sadd.s32 %s202, %s203
        %s205 = smul.addr %s204, 8
        %s206 = scalar_lea.vmem %s0, %s205
        %p207 = pneg %p59
        %p208 = pneg %p56
        %p209 = scmp.lt.s32.totalorder %s22, 1
        %s210 = scalar_select %p209, %s22, 1
        %p211 = scmp.lt.s32.totalorder %s24, 0
        %s212 = scalar_select %p211, %s24, 0
        %s213 = smul.addr %s212, 4
        %s214 = smul.addr %s210, 4
        %s215 = sadd.s32 %s213, %s214
        %s216 = smul.addr %s215, 8
        %s217 = scalar_lea.vmem %s1, %s216
        %p218 = pneg %p87
        %p219 = pneg %p84
        %p220 = scmp.lt.s32.totalorder %s22, 1
        %s221 = scalar_select %p220, %s22, 1
        %s222 = scalar_lea.vmem %s2, %s221
        %p223 = pneg %p113
        %p224 = pneg %p110
        %p225 = pneg %p141
        %p226 = pneg %p138
        %s227 = sand.u32 %s128, 1
        %s228 = scalar_lea.sflag [#allocation4], %s227
        %s229 = sand.u32 %s128, 1
        %s230 = smul.addr %s229, 64
        %s231 = scalar_lea.vmem [#allocation3], %s230
        %s232 = smul.u32 8, %s23
        %p233 = scmp.lt.s32.totalorder %s24, 0
        %s234 = scalar_select %p233, %s24, 0
        %p235 = scmp.lt.s32.totalorder %s232, 7
        %s236 = scalar_select %p235, %s232, 7
        %s237 = smul.addr %s234, 8
        %s238 = sadd.s32 %s236, %s237
        %s239 = smul.addr %s238, 8
        %s240 = scalar_lea.vmem %s0, %s239
        %s241 = smul.u32 8, %s23
        %p242 = scmp.lt.s32.totalorder %s22, 1
        %s243 = scalar_select %p242, %s22, 1
        %p244 = scmp.lt.s32.totalorder %s24, 0
        %s245 = scalar_select %p244, %s24, 0
        %s246 = smul.addr %s245, 4
        %s247 = smul.addr %s243, 4
        %s248 = sadd.s32 %s246, %s247
        %s249 = smul.addr %s248, 8
        %s250 = scalar_lea.vmem %s1, %s249
        %p251 = scmp.lt.s32.totalorder %s22, 1
        %s252 = scalar_select %p251, %s22, 1
        %s253 = scalar_lea.vmem %s2, %s252
        %s254 = smul.u32 8, %s23
        %p255 = scmp.eq.s32.totalorder %s24, 0
        // Predicated region
        $region33: #{tpu_custom_call.1} parent=31 // pred_check
          %p256 = pneg %p255
        $region34: #{tpu_custom_call.1} parent=31 // pred_check_branch
          %258 = sbr.rel (%p256) target = $region36
        $region35: #{tpu_custom_call.1} parent=31 // pred_region
          %259 = vst [vmem:[#allocation2] sm:$0xff] 0.0
          %260 = vst [vmem:[#allocation2 + $0x8] sm:$0xff] 0.0
          %261 = vst [vmem:[#allocation2 + $0x10] sm:$0xff] 0.0
          %262 = vst [vmem:[#allocation2 + $0x18] sm:$0xff] 0.0
          %263 = vst [vmem:[#allocation2 + $0x20] sm:$0xff] 0.0
          %264 = vst [vmem:[#allocation2 + $0x28] sm:$0xff] 0.0
          %265 = vst [vmem:[#allocation2 + $0x30] sm:$0xff] 0.0
          %266 = vst [vmem:[#allocation2 + $0x38] sm:$0xff] 0.0
        $region36: #{tpu_custom_call.1} parent=31 // pred_fallthru
          _
        %v267 = vld [vmem:[#allocation2] sm:$0xff]
        %v268 = vld [vmem:[#allocation2 + $0x8] sm:$0xff]
        %v269 = vld [vmem:[#allocation2 + $0x10] sm:$0xff]
        %v270 = vld [vmem:[#allocation2 + $0x18] sm:$0xff]
        %v271 = vld [vmem:[#allocation2 + $0x20] sm:$0xff]
        %v272 = vld [vmem:[#allocation2 + $0x28] sm:$0xff]
        %v273 = vld [vmem:[#allocation2 + $0x30] sm:$0xff]
        %v274 = vld [vmem:[#allocation2 + $0x38] sm:$0xff]
        %v275 = vld [vmem:[%s240] sm:$0xff]
        %v276 = vld [vmem:[%s240 + $0x8] sm:$0xff]
        %v277 = vld [vmem:[%s240 + $0x10] sm:$0xff]
        %v278 = vld [vmem:[%s240 + $0x18] sm:$0xff]
        %v279 = vld [vmem:[%s240 + $0x20] sm:$0xff]
        %v280 = vld [vmem:[%s240 + $0x28] sm:$0xff]
        %v281 = vld [vmem:[%s240 + $0x30] sm:$0xff]
        %v282 = vld [vmem:[%s240 + $0x38] sm:$0xff]
        %v283 = vld [vmem:[%s250] sm:$0xff]
        %v284 = vld [vmem:[%s250 + $0x8] sm:$0xff]
        %v285 = vld [vmem:[%s250 + $0x10] sm:$0xff]
        %v286 = vld [vmem:[%s250 + $0x18] sm:$0xff]
        %vm287 = vcmask 261120
        %v289 = vsel %vm287, %v275, 0
        %v292 = vsel %vm287, %v276, 0
        %v295 = vsel %vm287, %v277, 0
        %v298 = vsel %vm287, %v278, 0
        %v301 = vsel %vm287, %v279, 0
        %v304 = vsel %vm287, %v280, 0
        %v307 = vsel %vm287, %v281, 0
        %v310 = vsel %vm287, %v282, 0
        %312 = vmatprep.subr.mxu0 0.0
        %313 = vmatpush1.msra.mxu0 %v283
        %314 = vmatprep.subr.mxu0 0.0
        %315 = vmatpush1.msra.mxu0 %v284
        %316 = vmatprep.subr.mxu0 0.0
        %317 = vmatpush1.msra.mxu0 %v285
        %318 = vmatprep.subr.mxu0 0.0
        %319 = vmatpush1.msra.mxu0 %v286
        %320 = vmatprep.subr.mxu0 0.0
        %321 = vmatpush1.msra.mxu0 0.0
        %322 = vmatprep.subr.mxu0 0.0
        %323 = vmatpush1.msra.mxu0 0.0
        %324 = vmatprep.subr.mxu0 0.0
        %325 = vmatpush1.msra.mxu0 0.0
        %326 = vmatprep.subr.mxu0 0.0
        %327 = vmatpush1.msra.mxu0 0.0
        %328 = vmatprep.subr.mxu0 0.0
        %329 = vmatpush1.msra.mxu0 0.0
        %330 = vmatprep.subr.mxu0 0.0
        %331 = vmatpush1.msra.mxu0 0.0
        %332 = vmatprep.subr.mxu0 0.0
        %333 = vmatpush1.msra.mxu0 0.0
        %334 = vmatprep.subr.mxu0 0.0
        %335 = vmatpush1.msra.mxu0 0.0
        %336 = vmatprep.subr.mxu0 0.0
        %337 = vmatpush1.msra.mxu0 0.0
        %338 = vmatprep.subr.mxu0 0.0
        %339 = vmatpush1.msra.mxu0 0.0
        %340 = vmatprep.subr.mxu0 0.0
        %341 = vmatpush1.msra.mxu0 0.0
        %342 = vmatprep.subr.mxu0 0.0
        %343 = vmatpush1.msra.mxu0 0.0
        %344 = vmatprep.subr.mxu0 0.0
        %345 = vmatpush1.msra.mxu0 0.0
        %346 = vmatprep.subr.mxu0 0.0
        %347 = vmatpush1.msra.mxu0 0.0
        %348 = vmatprep.subr.mxu0 0.0
        %349 = vmatpush1.msra.mxu0 0.0
        %350 = vmatprep.subr.mxu0 0.0
        %351 = vmatpush1.msra.mxu0 0.0
        %352 = vmatprep.subr.mxu0 0.0
        %353 = vmatpush1.msra.mxu0 0.0
        %354 = vmatprep.subr.mxu0 0.0
        %355 = vmatpush1.msra.mxu0 0.0
        %356 = vmatprep.subr.mxu0 0.0
        %357 = vmatpush1.msra.mxu0 0.0
        %358 = vmatprep.subr.mxu0 0.0
        %359 = vmatpush1.msra.mxu0 0.0
        %360 = vmatprep.subr.mxu0 0.0
        %361 = vmatpush1.msra.mxu0 0.0
        %362 = vmatprep.subr.mxu0 0.0
        %363 = vmatpush1.msra.mxu0 0.0
        %364 = vmatprep.subr.mxu0 0.0
        %365 = vmatpush1.msra.mxu0 0.0
        %366 = vmatprep.subr.mxu0 0.0
        %367 = vmatpush1.msra.mxu0 0.0
        %368 = vmatprep.subr.mxu0 0.0
        %369 = vmatpush1.msra.mxu0 0.0
        %370 = vmatprep.subr.mxu0 0.0
        %371 = vmatpush1.msra.mxu0 0.0
        %372 = vmatprep.subr.mxu0 0.0
        %373 = vmatpush1.msra.mxu0 0.0
        %374 = vmatprep.subr.mxu0 0.0
        %375 = vmatpush1.msra.mxu0 0.0
        %376 = vmatprep.mubr.f32.mxu0 0.0
        %377 = vmatmul.mubr.f32.gmra.mrb[0].mxu0 %v289
        %v378 = vpop.f32.mrb[0].mxu0
        %v379 = vadd.f32 0.0, %v378
        %v380 = vpop.f32.mrb[0].mxu0
        %381 = vmatprep.mubr.f32.mxu0 0.0
        %382 = vmatmul.mubr.f32.gmra.mrb[0].mxu0 %v292
        %v383 = vpop.f32.mrb[0].mxu0
        %v384 = vadd.f32 0.0, %v383
        %v385 = vpop.f32.mrb[0].mxu0
        %386 = vmatprep.mubr.f32.mxu0 0.0
        %387 = vmatmul.mubr.f32.gmra.mrb[0].mxu0 %v295
        %v388 = vpop.f32.mrb[0].mxu0
        %v389 = vadd.f32 0.0, %v388
        %v390 = vpop.f32.mrb[0].mxu0
        %391 = vmatprep.mubr.f32.mxu0 0.0
        %392 = vmatmul.mubr.f32.gmra.mrb[0].mxu0 %v298
        %v393 = vpop.f32.mrb[0].mxu0
        %v394 = vadd.f32 0.0, %v393
        %v395 = vpop.f32.mrb[0].mxu0
        %396 = vmatprep.mubr.f32.mxu0 0.0
        %397 = vmatmul.mubr.f32.gmra.mrb[0].mxu0 %v301
        %v398 = vpop.f32.mrb[0].mxu0
        %v399 = vadd.f32 0.0, %v398
        %v400 = vpop.f32.mrb[0].mxu0
        %401 = vmatprep.mubr.f32.mxu0 0.0
        %402 = vmatmul.mubr.f32.gmra.mrb[0].mxu0 %v304
        %v403 = vpop.f32.mrb[0].mxu0
        %v404 = vadd.f32 0.0, %v403
        %v405 = vpop.f32.mrb[0].mxu0
        %406 = vmatprep.mubr.f32.mxu0 0.0
        %407 = vmatmul.mubr.f32.gmra.mrb[0].mxu0 %v307
        %v408 = vpop.f32.mrb[0].mxu0
        %v409 = vadd.f32 0.0, %v408
        %v410 = vpop.f32.mrb[0].mxu0
        %411 = vmatprep.mubr.f32.mxu0 0.0
        %412 = vmatmul.mubr.f32.gmra.mrb[0].mxu0 %v310
        %v413 = vpop.f32.mrb[0].mxu0
        %v414 = vadd.f32 0.0, %v413
        %v415 = vpop.f32.mrb[0].mxu0
        %416 = vdwg.mxu0
        %v417 = vadd.f32 %v267, %v379
        %v418 = vadd.f32 %v268, %v384
        %v419 = vadd.f32 %v269, %v389
        %v420 = vadd.f32 %v270, %v394
        %v421 = vadd.f32 %v271, %v399
        %v422 = vadd.f32 %v272, %v404
        %v423 = vadd.f32 %v273, %v409
        %v424 = vadd.f32 %v274, %v414
        %425 = vst [vmem:[#allocation2] sm:$0xff] %v417
        %426 = vst [vmem:[#allocation2 + $0x8] sm:$0xff] %v418
        %427 = vst [vmem:[#allocation2 + $0x10] sm:$0xff] %v419
        %428 = vst [vmem:[#allocation2 + $0x18] sm:$0xff] %v420
        %429 = vst [vmem:[#allocation2 + $0x20] sm:$0xff] %v421
        %430 = vst [vmem:[#allocation2 + $0x28] sm:$0xff] %v422
        %431 = vst [vmem:[#allocation2 + $0x30] sm:$0xff] %v423
        %432 = vst [vmem:[#allocation2 + $0x38] sm:$0xff] %v424
        // Predicated region
        $region37: #{tpu_custom_call.1} parent=31 // pred_check
          %p433 = pneg %p255
        $region38: #{tpu_custom_call.1} parent=31 // pred_check_branch
          %435 = sbr.rel (%p433) target = $region40
        $region39: #{tpu_custom_call.1} parent=31 // pred_region
          %v436 = vld [vmem:[#allocation2] sm:$0xff]
          %v437 = vld [vmem:[#allocation2 + $0x8] sm:$0xff]
          %v438 = vld [vmem:[#allocation2 + $0x10] sm:$0xff]
          %v439 = vld [vmem:[#allocation2 + $0x18] sm:$0xff]
          %v440 = vld [vmem:[#allocation2 + $0x20] sm:$0xff]
          %v441 = vld [vmem:[#allocation2 + $0x28] sm:$0xff]
          %v442 = vld [vmem:[#allocation2 + $0x30] sm:$0xff]
          %v443 = vld [vmem:[#allocation2 + $0x38] sm:$0xff]
          %v444 = vld [vmem:[%s253] sm:$0x1]
          %v446 = vlaneseq
          %v447 = vshrl.u32 %v446, 7
          %v448 = vsub.s32 0, %v447
          %v449 = vrot.slane %v444, %v448
          %v451 = vadd.f32 %v436, %v449
          %v452 = vadd.f32 %v437, %v449
          %v453 = vadd.f32 %v438, %v449
          %v454 = vadd.f32 %v439, %v449
          %v455 = vadd.f32 %v440, %v449
          %v456 = vadd.f32 %v441, %v449
          %v457 = vadd.f32 %v442, %v449
          %v458 = vadd.f32 %v443, %v449
          %459 = vst [vmem:[%s231] sm:$0xff] %v451
          %460 = vst [vmem:[%s231 + $0x8] sm:$0xff] %v452
          %461 = vst [vmem:[%s231 + $0x10] sm:$0xff] %v453
          %462 = vst [vmem:[%s231 + $0x18] sm:$0xff] %v454
          %463 = vst [vmem:[%s231 + $0x20] sm:$0xff] %v455
          %464 = vst [vmem:[%s231 + $0x28] sm:$0xff] %v456
          %465 = vst [vmem:[%s231 + $0x30] sm:$0xff] %v457
          %466 = vst [vmem:[%s231 + $0x38] sm:$0xff] %v458
        $region40: #{tpu_custom_call.1} parent=31 // pred_fallthru
          _
        %s467 = sand.u32 %s128, 1
        %s468 = scalar_lea.sflag [#allocation4], %s467
        %s469 = sand.u32 %s128, 1
        %s470 = smul.addr %s469, 64
        %s471 = scalar_lea.vmem [#allocation3], %s470
        // Predicated region
        $region41: #{tpu_custom_call.1} parent=31 // pred_check
          %p472 = pneg %p138
        $region42: #{tpu_custom_call.1} parent=31 // pred_check_branch
          %474 = sbr.rel (%p472) target = $region44
        $region43: #{tpu_custom_call.1} parent=31 // pred_region
          %s475 = smul.u32 8, %s23
          %s477 = ssub.s32 1024, 1024
          %478 = vsyncadd %s468, %s477
          %s479 = smul.addr %s22, 8
          %s480 = sadd.s32 %s475, %s479
          %s481 = smul.addr %s480, 128
          %s482 = scalar_lea.hbm %s3, %s481
          %s483 = sshll.u32 %s471, 4
          %s484 = int_to_ptr.vmem [resolvable:$true] %s483
          %489 = dma.vmem_to_hbm [thread:$0]  %s484, 1024, %s482, %s468, 128, 128, 8
        $region44: #{tpu_custom_call.1} parent=31 // pred_fallthru
          _
      $region32: #{tpu_custom_call.1} parent=5 // pred_fallthru
        _
      %p490 = scmp.le.s32.totalorder 2, %s12
      // Predicated region
      $region45: #{tpu_custom_call.1} parent=5 // pred_check
        %p491 = pneg %p490
      $region46: #{tpu_custom_call.1} parent=5 // pred_check_branch
        %493 = sbr.rel (%p491) target = $region48
      $region47: #{tpu_custom_call.1} parent=5 // pred_region
        %s494 = ssub.s32 %s12, 2
        // Predicated region
        $region49: #{tpu_custom_call.1} parent=47 // pred_check
          %p495 = pneg %p144
        $region50: #{tpu_custom_call.1} parent=47 // pred_check_branch
          %497 = sbr.rel (%p495) target = $region52
        $region51: #{tpu_custom_call.1} parent=47 // pred_region
          %s498 = sand.u32 %s129, 1
          %s499 = scalar_lea.sflag [#allocation4], %s498
          %s500 = sand.u32 %s129, 1
          %s501 = smul.addr %s500, 64
          %s502 = scalar_lea.vmem [#allocation3], %s501
          %503 = dma.done %s499, 1024
        $region52: #{tpu_custom_call.1} parent=47 // pred_fallthru
          _
      $region48: #{tpu_custom_call.1} parent=5 // pred_fallthru
        _
    $region6: #{tpu_custom_call.1} parent=1 // loop_footer
      %s16 = sadd.s32 1, %s12
    $region7: #{tpu_custom_call.1} parent=1 // loop_footer_branch
      %11 = sbr.rel target = $region3
    $region8: #{tpu_custom_call.1} parent=1 // loop_exit
      _
    %504 = vsyncpa [#allocation4], 1
    %s505 = scalar_lea.sflag [#allocation4], 1
    %506 = vsyncpa %s505, 1

</llo_original>
